<compile_context>
chip_gen: v5e
topology: v5e:2x2
jax: 0.10.0
libtpu: 0.0.40
codegen_flags: <defaults>
</compile_context>

<pallas_src>
import functools

import jax
import jax.numpy as jnp
from jax.experimental import pallas as pl
from jax.experimental.pallas import tpu as pltpu


def _outconv_kernel(x_ref, w_ref, b_ref, o_ref):
    # x_ref: (C_in, S, TILE_L)  VMEM — each x_ref[ic] is a dense (S, TILE_L) slab
    # w_ref: (C_out, C_in)      SMEM scalar table (resident)
    # b_ref: (C_out,)           SMEM
    # o_ref: (C_out, S, TILE_L) VMEM — full-slab, lane-dense stores
    c_in = x_ref.shape[0]
    c_out = o_ref.shape[0]

    for oc in range(c_out):  # unrolled at trace time (C_out is tiny)
        # Bias folded into the first term.  Slices are re-read from VMEM per
        # output channel (vld slots have slack), so nothing large stays live
        # across the oc loop.  Inputs are f32, so astype is elided.
        acc = w_ref[oc, 0] * x_ref[0].astype(jnp.float32) + b_ref[oc]
        for ic in range(1, c_in):
            acc = acc + w_ref[oc, ic] * x_ref[ic].astype(jnp.float32)
        o_ref[oc] = acc.astype(o_ref.dtype)


def _tile_defaults():
    """Generation-aware spatial tile target (in elements of H*W) + dual-core flag."""
    try:
        kind = jax.devices()[0].device_kind.lower()
    except Exception:
        kind = ""
    if "v7" in kind or "7x" in kind:
        return 262144, True     # ~7 MiB/step at 3.2 TB/s HBM; 2 TensorCores/chip
    if "v6" in kind:
        return 131072, False    # ~3.5 MiB/step at ~1.4 TB/s HBM
    if "v5" in kind:
        return 65536, False     # ~1.75 MiB/step; modest next to 16 MiB scoped default
    return 131072, False


@functools.partial(jax.jit, static_argnames=("tile_hw_target",))
def outconv(x_nchw, weight, bias, *, tile_hw_target=None):
    """1x1 Conv2d forward (matches nn.Conv2d(in_chan, out_chan, kernel_size=1)).

    x_nchw: (N, C_in, H, W) float32
    weight: (C_out, C_in, 1, 1) float32  (PyTorch Conv2d weight layout)
    bias:   (C_out,) float32
    returns (N, C_out, H, W) float32
    """
    N, C_in, H, W = x_nchw.shape
    C_out = weight.shape[0]
    HW = H * W

    auto_target, dual_core = _tile_defaults()
    if tile_hw_target is None:
        tile_hw_target = auto_target

    # Fold 8 sublanes of spatial into the block so each channel slice is a
    # dense (8, L) slab (full vreg utilization).  Free contiguous reshape.
    if HW % 8 == 0:
        S, L = 8, HW // 8
    else:
        S, L = 1, HW  # fallback for odd spatial sizes

    x4 = x_nchw.reshape(N, C_in, S, L)
    w2 = weight.reshape(C_out, C_in)

    # Lane tile: biggest lane-dense (multiple-of-128) tile under the target;
    # pl.cdiv + block masking handle any remainder.
    lane_target = max(tile_hw_target // S, 128)
    if L < 128:
        tile_l = L                          # tiny inputs: full (only legal) block
    elif L <= lane_target:
        tile_l = (L // 128) * 128           # lane-dense; remainder block if L%128
    else:
        tile_l = (lane_target // 128) * 128

    # v7x: 2 TensorCores split parallel grid axes — when N == 1 make sure the
    # spatial axis has >= 2 steps so the second core isn't idle.
    if dual_core and N == 1 and tile_l == L and L >= 256:
        tile_l = -(-(L // 2) // 128) * 128

    grid = (N, pl.cdiv(L, tile_l))

    y4 = pl.pallas_call(
        _outconv_kernel,
        out_shape=jax.ShapeDtypeStruct((N, C_out, S, L), x_nchw.dtype),
        grid=grid,
        in_specs=[
            # x tile: squeeze batch, channels leading, (8, tile_l) dense slabs.
            pl.BlockSpec((None, C_in, S, tile_l), lambda n, t: (n, 0, 0, t)),
            # Weight / bias: tiny scalar tables, resident in SMEM.
            pl.BlockSpec(memory_space=pltpu.MemorySpace.SMEM),
            pl.BlockSpec(memory_space=pltpu.MemorySpace.SMEM),
        ],
        out_specs=pl.BlockSpec((None, C_out, S, tile_l), lambda n, t: (n, 0, 0, t)),
        compiler_params=pltpu.CompilerParams(
            dimension_semantics=("parallel", "parallel"),
            # Post-fold usage is <= ~14 MiB double-buffered even at the v7x
            # target; 32 MiB covers it on all generations (v5e default is 16).
            vmem_limit_bytes=32 * 1024 * 1024,
        ),
    )(x4, w2, bias)

    return y4.reshape(N, C_out, H, W)


def _reference(x_nchw, weight, bias):
    # Pure-JAX reference for a 1x1 conv (einsum over channels).
    w = weight.reshape(weight.shape[0], weight.shape[1])  # (C_out, C_in)
    y = jnp.einsum("nihw,oi->nohw", x_nchw, w)
    return y + bias[None, :, None, None]


if __name__ == "__main__":
    key = jax.random.PRNGKey(0)
    k_x, k_w, k_b = jax.random.split(key, 3)

    # Small shapes consistent with OutConv(in_chan=4, out_chan=3).
    N, C_in, C_out, H, W = 2, 4, 3, 16, 16

    x = jax.random.normal(k_x, (N, C_in, H, W), dtype=jnp.float32)
    # Deterministic parameter init (PyTorch-like uniform bound 1/sqrt(fan_in)).
    bound = 1.0 / (C_in ** 0.5)
    weight = jax.random.uniform(
        k_w, (C_out, C_in, 1, 1), dtype=jnp.float32, minval=-bound, maxval=bound
    )
    bias = jax.random.uniform(
        k_b, (C_out,), dtype=jnp.float32, minval=-bound, maxval=bound
    )

    y = outconv(x, weight, bias)
    jax.block_until_ready(y)

    y_ref = _reference(x, weight, bias)
    assert y.shape == (N, C_out, H, W)
    assert jnp.allclose(y, y_ref, atol=1e-5, rtol=1e-5)

    print("KERNEL_OK")
</pallas_src>

<mosaic_0001>
module attributes {stable_mosaic.version = 11 : i64} {
  func.func @_outconv_kernel(%arg0: i32, %arg1: i32, %arg2: memref<1x4x8x32xf32, #tpu.memory_space<vmem>>, %arg3: memref<3x4xf32, #tpu.memory_space<smem>>, %arg4: memref<3xf32, #tpu.memory_space<smem>>, %arg5: memref<1x3x8x32xf32, #tpu.memory_space<vmem>>) attributes {dimension_semantics = [#tpu.dimension_semantics<parallel>, #tpu.dimension_semantics<parallel>], iteration_bounds = array<i64: 2, 1>, scalar_prefetch = 0 : i64, scratch_operands = 0 : i64, tpu.core_type = #tpu.core_type<tc>, window_params = [{transform_indices = @transform_0, window_bounds = array<i64: 1, 4, 8, 32>}, {transform_indices = @transform_1, window_bounds = array<i64: 3, 4>}, {transform_indices = @transform_2, window_bounds = array<i64: 3>}, {transform_indices = @transform_3, window_bounds = array<i64: 1, 3, 8, 32>}]} {
    %c0 = arith.constant 0 : index
    %c0_0 = arith.constant 0 : index
    %0 = memref.load %arg3[%c0, %c0_0] : memref<3x4xf32, #tpu.memory_space<smem>>
    %c0_1 = arith.constant 0 : index
    %c0_2 = arith.constant 0 : index
    %c0_3 = arith.constant 0 : index
    %c0_4 = arith.constant 0 : index
    %1 = vector.load %arg2[%c0_1, %c0_2, %c0_3, %c0_4] : memref<1x4x8x32xf32, #tpu.memory_space<vmem>>, vector<1x1x8x32xf32>
    %2 = vector.shape_cast %1 : vector<1x1x8x32xf32> to vector<8x32xf32>
    %3 = vector.broadcast %0 : f32 to vector<8x32xf32>
    %4 = arith.mulf %3, %2 : vector<8x32xf32>
    %c0_5 = arith.constant 0 : index
    %5 = memref.load %arg4[%c0_5] : memref<3xf32, #tpu.memory_space<smem>>
    %6 = vector.broadcast %5 : f32 to vector<8x32xf32>
    %7 = arith.addf %4, %6 : vector<8x32xf32>
    %c0_6 = arith.constant 0 : index
    %c1 = arith.constant 1 : index
    %8 = memref.load %arg3[%c0_6, %c1] : memref<3x4xf32, #tpu.memory_space<smem>>
    %c0_7 = arith.constant 0 : index
    %c1_8 = arith.constant 1 : index
    %c0_9 = arith.constant 0 : index
    %c0_10 = arith.constant 0 : index
    %9 = vector.load %arg2[%c0_7, %c1_8, %c0_9, %c0_10] : memref<1x4x8x32xf32, #tpu.memory_space<vmem>>, vector<1x1x8x32xf32>
    %10 = vector.shape_cast %9 : vector<1x1x8x32xf32> to vector<8x32xf32>
    %11 = vector.broadcast %8 : f32 to vector<8x32xf32>
    %12 = arith.mulf %11, %10 : vector<8x32xf32>
    %13 = arith.addf %7, %12 : vector<8x32xf32>
    %c0_11 = arith.constant 0 : index
    %c2 = arith.constant 2 : index
    %14 = memref.load %arg3[%c0_11, %c2] : memref<3x4xf32, #tpu.memory_space<smem>>
    %c0_12 = arith.constant 0 : index
    %c2_13 = arith.constant 2 : index
    %c0_14 = arith.constant 0 : index
    %c0_15 = arith.constant 0 : index
    %15 = vector.load %arg2[%c0_12, %c2_13, %c0_14, %c0_15] : memref<1x4x8x32xf32, #tpu.memory_space<vmem>>, vector<1x1x8x32xf32>
    %16 = vector.shape_cast %15 : vector<1x1x8x32xf32> to vector<8x32xf32>
    %17 = vector.broadcast %14 : f32 to vector<8x32xf32>
    %18 = arith.mulf %17, %16 : vector<8x32xf32>
    %19 = arith.addf %13, %18 : vector<8x32xf32>
    %c0_16 = arith.constant 0 : index
    %c3 = arith.constant 3 : index
    %20 = memref.load %arg3[%c0_16, %c3] : memref<3x4xf32, #tpu.memory_space<smem>>
    %c0_17 = arith.constant 0 : index
    %c3_18 = arith.constant 3 : index
    %c0_19 = arith.constant 0 : index
    %c0_20 = arith.constant 0 : index
    %21 = vector.load %arg2[%c0_17, %c3_18, %c0_19, %c0_20] : memref<1x4x8x32xf32, #tpu.memory_space<vmem>>, vector<1x1x8x32xf32>
    %22 = vector.shape_cast %21 : vector<1x1x8x32xf32> to vector<8x32xf32>
    %23 = vector.broadcast %20 : f32 to vector<8x32xf32>
    %24 = arith.mulf %23, %22 : vector<8x32xf32>
    %25 = arith.addf %19, %24 : vector<8x32xf32>
    %c0_21 = arith.constant 0 : index
    %c0_22 = arith.constant 0 : index
    %c0_23 = arith.constant 0 : index
    %c0_24 = arith.constant 0 : index
    %26 = vector.load %arg5[%c0_21, %c0_22, %c0_23, %c0_24] : memref<1x3x8x32xf32, #tpu.memory_space<vmem>>, vector<1x1x8x32xf32>
    %27 = vector.shape_cast %26 : vector<1x1x8x32xf32> to vector<8x32xf32>
    %28 = vector.shape_cast %25 : vector<8x32xf32> to vector<1x1x8x32xf32>
    tpu.vector_store %arg5[%c0_21, %c0_22, %c0_23, %c0_24], %28 {strides = array<i32>} : memref<1x3x8x32xf32, #tpu.memory_space<vmem>>, vector<1x1x8x32xf32>,
    %c1_25 = arith.constant 1 : index
    %c0_26 = arith.constant 0 : index
    %29 = memref.load %arg3[%c1_25, %c0_26] : memref<3x4xf32, #tpu.memory_space<smem>>
    %c0_27 = arith.constant 0 : index
    %c0_28 = arith.constant 0 : index
    %c0_29 = arith.constant 0 : index
    %c0_30 = arith.constant 0 : index
    %30 = vector.load %arg2[%c0_27, %c0_28, %c0_29, %c0_30] : memref<1x4x8x32xf32, #tpu.memory_space<vmem>>, vector<1x1x8x32xf32>
    %31 = vector.shape_cast %30 : vector<1x1x8x32xf32> to vector<8x32xf32>
    %32 = vector.broadcast %29 : f32 to vector<8x32xf32>
    %33 = arith.mulf %32, %31 : vector<8x32xf32>
    %c1_31 = arith.constant 1 : index
    %34 = memref.load %arg4[%c1_31] : memref<3xf32, #tpu.memory_space<smem>>
    %35 = vector.broadcast %34 : f32 to vector<8x32xf32>
    %36 = arith.addf %33, %35 : vector<8x32xf32>
    %c1_32 = arith.constant 1 : index
    %c1_33 = arith.constant 1 : index
    %37 = memref.load %arg3[%c1_32, %c1_33] : memref<3x4xf32, #tpu.memory_space<smem>>
    %c0_34 = arith.constant 0 : index
    %c1_35 = arith.constant 1 : index
    %c0_36 = arith.constant 0 : index
    %c0_37 = arith.constant 0 : index
    %38 = vector.load %arg2[%c0_34, %c1_35, %c0_36, %c0_37] : memref<1x4x8x32xf32, #tpu.memory_space<vmem>>, vector<1x1x8x32xf32>
    %39 = vector.shape_cast %38 : vector<1x1x8x32xf32> to vector<8x32xf32>
    %40 = vector.broadcast %37 : f32 to vector<8x32xf32>
    %41 = arith.mulf %40, %39 : vector<8x32xf32>
    %42 = arith.addf %36, %41 : vector<8x32xf32>
    %c1_38 = arith.constant 1 : index
    %c2_39 = arith.constant 2 : index
    %43 = memref.load %arg3[%c1_38, %c2_39] : memref<3x4xf32, #tpu.memory_space<smem>>
    %c0_40 = arith.constant 0 : index
    %c2_41 = arith.constant 2 : index
    %c0_42 = arith.constant 0 : index
    %c0_43 = arith.constant 0 : index
    %44 = vector.load %arg2[%c0_40, %c2_41, %c0_42, %c0_43] : memref<1x4x8x32xf32, #tpu.memory_space<vmem>>, vector<1x1x8x32xf32>
    %45 = vector.shape_cast %44 : vector<1x1x8x32xf32> to vector<8x32xf32>
    %46 = vector.broadcast %43 : f32 to vector<8x32xf32>
    %47 = arith.mulf %46, %45 : vector<8x32xf32>
    %48 = arith.addf %42, %47 : vector<8x32xf32>
    %c1_44 = arith.constant 1 : index
    %c3_45 = arith.constant 3 : index
    %49 = memref.load %arg3[%c1_44, %c3_45] : memref<3x4xf32, #tpu.memory_space<smem>>
    %c0_46 = arith.constant 0 : index
    %c3_47 = arith.constant 3 : index
    %c0_48 = arith.constant 0 : index
    %c0_49 = arith.constant 0 : index
    %50 = vector.load %arg2[%c0_46, %c3_47, %c0_48, %c0_49] : memref<1x4x8x32xf32, #tpu.memory_space<vmem>>, vector<1x1x8x32xf32>
    %51 = vector.shape_cast %50 : vector<1x1x8x32xf32> to vector<8x32xf32>
    %52 = vector.broadcast %49 : f32 to vector<8x32xf32>
    %53 = arith.mulf %52, %51 : vector<8x32xf32>
    %54 = arith.addf %48, %53 : vector<8x32xf32>
    %c0_50 = arith.constant 0 : index
    %c1_51 = arith.constant 1 : index
    %c0_52 = arith.constant 0 : index
    %c0_53 = arith.constant 0 : index
    %55 = vector.load %arg5[%c0_50, %c1_51, %c0_52, %c0_53] : memref<1x3x8x32xf32, #tpu.memory_space<vmem>>, vector<1x1x8x32xf32>
    %56 = vector.shape_cast %55 : vector<1x1x8x32xf32> to vector<8x32xf32>
    %57 = vector.shape_cast %54 : vector<8x32xf32> to vector<1x1x8x32xf32>
    tpu.vector_store %arg5[%c0_50, %c1_51, %c0_52, %c0_53], %57 {strides = array<i32>} : memref<1x3x8x32xf32, #tpu.memory_space<vmem>>, vector<1x1x8x32xf32>,
    %c2_54 = arith.constant 2 : index
    %c0_55 = arith.constant 0 : index
    %58 = memref.load %arg3[%c2_54, %c0_55] : memref<3x4xf32, #tpu.memory_space<smem>>
    %c0_56 = arith.constant 0 : index
    %c0_57 = arith.constant 0 : index
    %c0_58 = arith.constant 0 : index
    %c0_59 = arith.constant 0 : index
    %59 = vector.load %arg2[%c0_56, %c0_57, %c0_58, %c0_59] : memref<1x4x8x32xf32, #tpu.memory_space<vmem>>, vector<1x1x8x32xf32>
    %60 = vector.shape_cast %59 : vector<1x1x8x32xf32> to vector<8x32xf32>
    %61 = vector.broadcast %58 : f32 to vector<8x32xf32>
    %62 = arith.mulf %61, %60 : vector<8x32xf32>
    %c2_60 = arith.constant 2 : index
    %63 = memref.load %arg4[%c2_60] : memref<3xf32, #tpu.memory_space<smem>>
    %64 = vector.broadcast %63 : f32 to vector<8x32xf32>
    %65 = arith.addf %62, %64 : vector<8x32xf32>
    %c2_61 = arith.constant 2 : index
    %c1_62 = arith.constant 1 : index
    %66 = memref.load %arg3[%c2_61, %c1_62] : memref<3x4xf32, #tpu.memory_space<smem>>
    %c0_63 = arith.constant 0 : index
    %c1_64 = arith.constant 1 : index
    %c0_65 = arith.constant 0 : index
    %c0_66 = arith.constant 0 : index
    %67 = vector.load %arg2[%c0_63, %c1_64, %c0_65, %c0_66] : memref<1x4x8x32xf32, #tpu.memory_space<vmem>>, vector<1x1x8x32xf32>
    %68 = vector.shape_cast %67 : vector<1x1x8x32xf32> to vector<8x32xf32>
    %69 = vector.broadcast %66 : f32 to vector<8x32xf32>
    %70 = arith.mulf %69, %68 : vector<8x32xf32>
    %71 = arith.addf %65, %70 : vector<8x32xf32>
    %c2_67 = arith.constant 2 : index
    %c2_68 = arith.constant 2 : index
    %72 = memref.load %arg3[%c2_67, %c2_68] : memref<3x4xf32, #tpu.memory_space<smem>>
    %c0_69 = arith.constant 0 : index
    %c2_70 = arith.constant 2 : index
    %c0_71 = arith.constant 0 : index
    %c0_72 = arith.constant 0 : index
    %73 = vector.load %arg2[%c0_69, %c2_70, %c0_71, %c0_72] : memref<1x4x8x32xf32, #tpu.memory_space<vmem>>, vector<1x1x8x32xf32>
    %74 = vector.shape_cast %73 : vector<1x1x8x32xf32> to vector<8x32xf32>
    %75 = vector.broadcast %72 : f32 to vector<8x32xf32>
    %76 = arith.mulf %75, %74 : vector<8x32xf32>
    %77 = arith.addf %71, %76 : vector<8x32xf32>
    %c2_73 = arith.constant 2 : index
    %c3_74 = arith.constant 3 : index
    %78 = memref.load %arg3[%c2_73, %c3_74] : memref<3x4xf32, #tpu.memory_space<smem>>
    %c0_75 = arith.constant 0 : index
    %c3_76 = arith.constant 3 : index
    %c0_77 = arith.constant 0 : index
    %c0_78 = arith.constant 0 : index
    %79 = vector.load %arg2[%c0_75, %c3_76, %c0_77, %c0_78] : memref<1x4x8x32xf32, #tpu.memory_space<vmem>>, vector<1x1x8x32xf32>
    %80 = vector.shape_cast %79 : vector<1x1x8x32xf32> to vector<8x32xf32>
    %81 = vector.broadcast %78 : f32 to vector<8x32xf32>
    %82 = arith.mulf %81, %80 : vector<8x32xf32>
    %83 = arith.addf %77, %82 : vector<8x32xf32>
    %c0_79 = arith.constant 0 : index
    %c2_80 = arith.constant 2 : index
    %c0_81 = arith.constant 0 : index
    %c0_82 = arith.constant 0 : index
    %84 = vector.load %arg5[%c0_79, %c2_80, %c0_81, %c0_82] : memref<1x3x8x32xf32, #tpu.memory_space<vmem>>, vector<1x1x8x32xf32>
    %85 = vector.shape_cast %84 : vector<1x1x8x32xf32> to vector<8x32xf32>
    %86 = vector.shape_cast %83 : vector<8x32xf32> to vector<1x1x8x32xf32>
    tpu.vector_store %arg5[%c0_79, %c2_80, %c0_81, %c0_82], %86 {strides = array<i32>} : memref<1x3x8x32xf32, #tpu.memory_space<vmem>>, vector<1x1x8x32xf32>,
    return
  }
  func.func @transform_0(%arg0: i32, %arg1: i32) -> (i32, i32, i32, i32) {
    %c0_i32 = arith.constant 0 : i32
    %c0_i32_0 = arith.constant 0 : i32
    %c0_i32_1 = arith.constant 0 : i32
    return %arg0, %c0_i32, %c0_i32_0, %arg1 : i32, i32, i32, i32
  }
  func.func @transform_1(%arg0: i32, %arg1: i32) -> (i32, i32) {
    %c0_i32 = arith.constant 0 : i32
    %c0_i32_0 = arith.constant 0 : i32
    %c0_i32_1 = arith.constant 0 : i32
    return %c0_i32, %c0_i32_0 : i32, i32
  }
  func.func @transform_2(%arg0: i32, %arg1: i32) -> i32 {
    %c0_i32 = arith.constant 0 : i32
    %c0_i32_0 = arith.constant 0 : i32
    return %c0_i32 : i32
  }
  func.func @transform_3(%arg0: i32, %arg1: i32) -> (i32, i32, i32, i32) {
    %c0_i32 = arith.constant 0 : i32
    %c0_i32_0 = arith.constant 0 : i32
    %c0_i32_1 = arith.constant 0 : i32
    return %arg0, %c0_i32, %c0_i32_0, %arg1 : i32, i32, i32, i32
  }
}

</mosaic_0001>

<llo_original>
// kernel: outconv.1
$region0: #{outconv.1}
  #allocation0 [shape = 'u32[]', space=smem, size = 0x4, offset = 0x4, fixed_abs, tag = 'smem constant byte address 0x4 - core index']
  #allocation1 [shape = 'u32[72,128]{1,0:T(1,128)}', space=vmem, size = 0x9000, scoped, tag = 'internal scratch']
  %s0 = inlined_call_operand.vmem [shape: f32[2,4,8,32], index: 0, kind: input, shape index: {}]
  %s1 = inlined_call_operand.vmem [shape: f32[3,4], index: 1, kind: input, shape index: {}]
  %s2 = inlined_call_operand.vmem [shape: f32[3], index: 2, kind: input, shape index: {}]
  %s3 = inlined_call_operand.vmem [shape: f32[2,3,8,32], index: 3, kind: output, shape index: {}]
  %s4 = sld [smem:[#allocation0]]
  $region53: #{outconv.1} parent=0
    _
  %s6 = ssub.s32 1, %s4
  %s7 = scalar_select 0, %s6, %s4
  $region1: #{outconv.1} parent=0
    #allocation2 [shape = 'u8[2048]{0}', space=smem, size = 0x800, scoped, tag = 'input window, operand 1, single buffered']
    #allocation3 [shape = 's32[2]{0}', space=sflag, size = 0x8, scoped, tag = 'scoped memory for outconv.1']
    #allocation4 [shape = 'u8[512]{0}', space=smem, size = 0x200, scoped, tag = 'input window, operand 2, single buffered']
    #allocation5 [shape = 's32[1]{0}', space=sflag, size = 0x4, scoped, tag = 'scoped memory for outconv.1']
    %8 = vsyncpa [#allocation3], 0
    %9 = vsyncpa [#allocation5], 0
    loop: start=0, step=1, limit=4
    $region2: #{outconv.1} parent=1 // loop_pre_header
      _
    $region3: #{outconv.1} parent=1 // loop_header
      %s11 = sphi 0, %s15
      %p12 = scmp.ge.s32.totalorder %s11, 4
      %s18 = sphi 0, %s30
      %s19 = sphi 0, %s26
      %s20 = sphi 0, %s18
      %s21 = sphi 0, %s19
      %s22 = sphi 0, %s20
      %s23 = sphi 0, %s21
      %s35 = sphi 0, %s37
      %s38 = sphi 0, %s35
      %s39 = sphi 0, %s38
      %s55 = sphi 0, %s39
      %s59 = sphi 0, %s59
      %s61 = sphi 0, %s59
      %s62 = sphi 0, %s61
      %s76 = sphi 0, %s62
      %s80 = sphi 0, %s80
      %s82 = sphi 0, %s80
      %s83 = sphi 0, %s82
      %s97 = sphi 0, %s83
      %s105 = sphi 0, %s107
      %s108 = sphi 0, %s105
      %s109 = sphi 0, %s108
      %s125 = sphi 0, %s109
    $region4: #{outconv.1} parent=1 // loop_header_branch
      %14 = sbr.rel (%p12) target = $region8
    $region5: #{outconv.1} parent=1 // loop_body
      %s16 = ssub.s32 %s11, 1
      %s17 = ssub.s32 %s11, 2
      %s24 = sadd.s32 1, %s19
      %p25 = scmp.ge.s32.totalorder %s24, 1
      %s26 = scalar_select %p25, 0, %s24
      %s27 = sadd.s32 1, %s18
      %s28 = scalar_select %p25, %s27, %s18
      %p29 = scmp.ge.s32.totalorder %s28, 2
      %s30 = scalar_select %p29, 0, %s28
      %s31 = ssub.s32 %s18, %s30
      %s32 = ssub.s32 %s19, %s26
      %s33 = sor.u32 %s31, %s32
      %p34 = scmp.eq.s32.totalorder %s33, 0
      %s36 = sadd.s32 %s35, 1
      %s37 = scalar_select %p34, %s35, %s36
      %p40 = pneg %p34
      %p41 = scmp.eq.s32.totalorder %s11, 1
      %p42 = por %p40, %p41
      %p43 = scmp.ne.s32.totalorder %s35, %s38
      %p44 = scmp.eq.s32.totalorder %s11, 0
      %p45 = por %p43, %p44
      %p46 = scmp.ne.s32.totalorder %s35, %s38
      %p47 = scmp.eq.s32.totalorder %s16, 1
      %p48 = por %p46, %p47
      %p49 = scmp.ne.s32.totalorder %s38, %s39
      %p50 = scmp.eq.s32.totalorder %s16, 0
      %p51 = por %p49, %p50
      %p52 = scmp.ne.s32.totalorder %s38, %s39
      %p53 = scmp.eq.s32.totalorder %s17, 1
      %p54 = por %p52, %p53
      %p56 = scmp.ne.s32.totalorder %s39, %s55
      %p57 = scmp.eq.s32.totalorder %s17, 0
      %p58 = por %p56, %p57
      %s60 = sadd.s32 %s59, 1
      %p63 = scmp.eq.s32.totalorder %s11, 1
      %p64 = scmp.ne.s32.totalorder %s59, %s61
      %p65 = scmp.eq.s32.totalorder %s11, 0
      %p66 = por %p64, %p65
      %p67 = scmp.ne.s32.totalorder %s59, %s61
      %p68 = scmp.eq.s32.totalorder %s16, 1
      %p69 = por %p67, %p68
      %p70 = scmp.ne.s32.totalorder %s61, %s62
      %p71 = scmp.eq.s32.totalorder %s16, 0
      %p72 = por %p70, %p71
      %p73 = scmp.ne.s32.totalorder %s61, %s62
      %p74 = scmp.eq.s32.totalorder %s17, 1
      %p75 = por %p73, %p74
      %p77 = scmp.ne.s32.totalorder %s62, %s76
      %p78 = scmp.eq.s32.totalorder %s17, 0
      %p79 = por %p77, %p78
      %s81 = sadd.s32 %s80, 1
      %p84 = scmp.eq.s32.totalorder %s11, 1
      %p85 = scmp.ne.s32.totalorder %s80, %s82
      %p86 = scmp.eq.s32.totalorder %s11, 0
      %p87 = por %p85, %p86
      %p88 = scmp.ne.s32.totalorder %s80, %s82
      %p89 = scmp.eq.s32.totalorder %s16, 1
      %p90 = por %p88, %p89
      %p91 = scmp.ne.s32.totalorder %s82, %s83
      %p92 = scmp.eq.s32.totalorder %s16, 0
      %p93 = por %p91, %p92
      %p94 = scmp.ne.s32.totalorder %s82, %s83
      %p95 = scmp.eq.s32.totalorder %s17, 1
      %p96 = por %p94, %p95
      %p98 = scmp.ne.s32.totalorder %s83, %s97
      %p99 = scmp.eq.s32.totalorder %s17, 0
      %p100 = por %p98, %p99
      %s101 = ssub.s32 %s18, %s30
      %s102 = ssub.s32 %s19, %s26
      %s103 = sor.u32 %s101, %s102
      %p104 = scmp.eq.s32.totalorder %s103, 0
      %s106 = sadd.s32 %s105, 1
      %s107 = scalar_select %p104, %s105, %s106
      %p110 = pneg %p104
      %p111 = scmp.eq.s32.totalorder %s11, 1
      %p112 = por %p110, %p111
      %p113 = scmp.ne.s32.totalorder %s105, %s108
      %p114 = scmp.eq.s32.totalorder %s11, 0
      %p115 = por %p113, %p114
      %p116 = scmp.ne.s32.totalorder %s105, %s108
      %p117 = scmp.eq.s32.totalorder %s16, 1
      %p118 = por %p116, %p117
      %p119 = scmp.ne.s32.totalorder %s108, %s109
      %p120 = scmp.eq.s32.totalorder %s16, 0
      %p121 = por %p119, %p120
      %p122 = scmp.ne.s32.totalorder %s108, %s109
      %p123 = scmp.eq.s32.totalorder %s17, 1
      %p124 = por %p122, %p123
      %p126 = scmp.ne.s32.totalorder %s109, %s125
      %p127 = scmp.eq.s32.totalorder %s17, 0
      %p128 = por %p126, %p127
      %p129 = scmp.le.s32.totalorder 1, %s11
      %p130 = scmp.lt.s32.totalorder %s11, 3
      %p131 = pnand %p129, %p130
      %p132 = pneg %p131
      // Predicated region
      $region9: #{outconv.1} parent=5 // pred_check
        _
      $region10: #{outconv.1} parent=5 // pred_check_branch
        %134 = sbr.rel (%p131) target = $region12
      $region11: #{outconv.1} parent=5 // pred_region
        %s135 = ssub.s32 %s11, 1
        // Predicated region
        $region13: #{outconv.1} parent=11 // pred_check
          %p136 = pneg %p72
        $region14: #{outconv.1} parent=11 // pred_check_branch
          %138 = sbr.rel (%p136) target = $region16
        $region15: #{outconv.1} parent=11 // pred_region
          %140 = vsyncadd [#allocation3], 0
          %s142 = sshll.u32 %s1, 4
          %s143 = int_to_ptr.vmem [resolvable:$true] %s142
          %145 = dma.vmem_to_smem %s143, 64, [#allocation2], [#allocation3]
        $region16: #{outconv.1} parent=11 // pred_fallthru
          _
        // Predicated region
        $region17: #{outconv.1} parent=11 // pred_check
          %p146 = pneg %p93
        $region18: #{outconv.1} parent=11 // pred_check_branch
          %148 = sbr.rel (%p146) target = $region20
        $region19: #{outconv.1} parent=11 // pred_region
          %150 = vsyncadd [#allocation5], 0
          %s152 = sshll.u32 %s2, 4
          %s153 = int_to_ptr.vmem [resolvable:$true] %s152
          %155 = dma.vmem_to_smem %s153, 16, [#allocation4], [#allocation5]
        $region20: #{outconv.1} parent=11 // pred_fallthru
          _
      $region12: #{outconv.1} parent=5 // pred_fallthru
        _
      %p156 = scmp.lt.s32.totalorder %s11, 2
      // Predicated region
      $region21: #{outconv.1} parent=5 // pred_check
        %p157 = pneg %p156
      $region22: #{outconv.1} parent=5 // pred_check_branch
        %159 = sbr.rel (%p157) target = $region24
      $region23: #{outconv.1} parent=5 // pred_region
        // Predicated region
        $region25: #{outconv.1} parent=23 // pred_check
          %p160 = pneg %p45
        $region26: #{outconv.1} parent=23 // pred_check_branch
          %162 = sbr.rel (%p160) target = $region28
        $region27: #{outconv.1} parent=23 // pred_region
          %p163 = scmp.lt.s32.totalorder %s18, 1
          %s164 = scalar_select %p163, %s18, 1
          %p165 = scmp.lt.s32.totalorder %s19, 0
          %s166 = scalar_select %p165, %s19, 0
          %s167 = smul.addr %s164, 4
          %s168 = sadd.s32 %s166, %s167
          %s169 = smul.addr %s168, 8
          %s170 = scalar_lea.vmem %s0, %s169
        $region28: #{outconv.1} parent=23 // pred_fallthru
          _
      $region24: #{outconv.1} parent=5 // pred_fallthru
        _
      %p171 = scmp.le.s32.totalorder 1, %s11
      %p172 = scmp.lt.s32.totalorder %s11, 3
      %p173 = pnand %p171, %p172
      %p174 = pneg %p173
      // Predicated region
      $region29: #{outconv.1} parent=5 // pred_check
        _
      $region30: #{outconv.1} parent=5 // pred_check_branch
        %176 = sbr.rel (%p173) target = $region32
      $region31: #{outconv.1} parent=5 // pred_region
        %s177 = ssub.s32 %s11, 1
        // Predicated region
        $region33: #{outconv.1} parent=31 // pred_check
          %p178 = pneg %p72
        $region34: #{outconv.1} parent=31 // pred_check_branch
          %180 = sbr.rel (%p178) target = $region36
        $region35: #{outconv.1} parent=31 // pred_region
          %182 = dma.done [#allocation3], 64
        $region36: #{outconv.1} parent=31 // pred_fallthru
          _
        // Predicated region
        $region37: #{outconv.1} parent=31 // pred_check
          %p183 = pneg %p93
        $region38: #{outconv.1} parent=31 // pred_check_branch
          %185 = sbr.rel (%p183) target = $region40
        $region39: #{outconv.1} parent=31 // pred_region
          %187 = dma.done [#allocation5], 16
        $region40: #{outconv.1} parent=31 // pred_fallthru
          _
        %188 = sfence
        %p189 = scmp.lt.s32.totalorder %s20, 1
        %s190 = scalar_select %p189, %s20, 1
        %p191 = scmp.lt.s32.totalorder %s21, 0
        %s192 = scalar_select %p191, %s21, 0
        %s193 = smul.addr %s190, 4
        %s194 = sadd.s32 %s192, %s193
        %s195 = smul.addr %s194, 8
        %s196 = scalar_lea.vmem %s0, %s195
        %p197 = pneg %p51
        %p198 = pneg %p48
        %p199 = pneg %p72
        %p200 = pneg %p69
        %p201 = pneg %p93
        %p202 = pneg %p90
        %p203 = pneg %p121
        %p204 = pneg %p118
        %p205 = scmp.lt.s32.totalorder %s20, 1
        %s206 = scalar_select %p205, %s20, 1
        %p207 = scmp.lt.s32.totalorder %s21, 0
        %s208 = scalar_select %p207, %s21, 0
        %s209 = smul.addr %s206, 3
        %s210 = sadd.s32 %s208, %s209
        %s211 = smul.addr %s210, 8
        %s212 = scalar_lea.vmem %s3, %s211
        %p213 = scmp.lt.s32.totalorder %s20, 1
        %s214 = scalar_select %p213, %s20, 1
        %p215 = scmp.lt.s32.totalorder %s21, 0
        %s216 = scalar_select %p215, %s21, 0
        %s217 = smul.addr %s214, 4
        %s218 = sadd.s32 %s216, %s217
        %s219 = smul.addr %s218, 8
        %s220 = scalar_lea.vmem %s0, %s219
        %p221 = scmp.lt.s32.totalorder %s20, 1
        %s222 = scalar_select %p221, %s20, 1
        %p223 = scmp.lt.s32.totalorder %s21, 0
        %s224 = scalar_select %p223, %s21, 0
        %s225 = smul.addr %s222, 3
        %s226 = sadd.s32 %s224, %s225
        %s227 = smul.addr %s226, 8
        %s228 = scalar_lea.vmem %s3, %s227
        %s229 = sld [smem:[#allocation2]]
        %v230 = vld [vmem:[%s220] sm:$0xff]
        %v231 = vstv %s229
        %v232 = vmul.f32 %v231, %v230
        %s233 = sld [smem:[#allocation4]]
        %v234 = vstv %s233
        %v235 = vadd.f32 %v232, %v234
        %s236 = sld [smem:[#allocation2 + $0x1]]
        %s237 = scalar_lea.vmem %s220, 8
        %v238 = vld [vmem:[%s237] sm:$0xff]
        %v239 = vstv %s236
        %v240 = vmul.f32 %v239, %v238
        %v241 = vadd.f32 %v235, %v240
        %s242 = sld [smem:[#allocation2 + $0x2]]
        %s243 = scalar_lea.vmem %s220, 16
        %v244 = vld [vmem:[%s243] sm:$0xff]
        %v245 = vstv %s242
        %v246 = vmul.f32 %v245, %v244
        %v247 = vadd.f32 %v241, %v246
        %s248 = sld [smem:[#allocation2 + $0x3]]
        %s249 = scalar_lea.vmem %s220, 24
        %v250 = vld [vmem:[%s249] sm:$0xff]
        %v251 = vstv %s248
        %v252 = vmul.f32 %v251, %v250
        %v253 = vadd.f32 %v247, %v252
        %vm254 = vcmask 261120
        %255 = vst.msk [vmem:[%s228] sm:$0xff] %vm254, %v253
        %s256 = sld [smem:[#allocation2 + $0x80]]
        %v257 = vld [vmem:[%s220] sm:$0xff]
        %v258 = vstv %s256
        %v259 = vmul.f32 %v258, %v257
        %s260 = sld [smem:[#allocation4 + $0x1]]
        %v261 = vstv %s260
        %v262 = vadd.f32 %v259, %v261
        %s263 = sld [smem:[#allocation2 + $0x81]]
        %v264 = vld [vmem:[%s237] sm:$0xff]
        %v265 = vstv %s263
        %v266 = vmul.f32 %v265, %v264
        %v267 = vadd.f32 %v262, %v266
        %s268 = sld [smem:[#allocation2 + $0x82]]
        %v269 = vld [vmem:[%s243] sm:$0xff]
        %v270 = vstv %s268
        %v271 = vmul.f32 %v270, %v269
        %v272 = vadd.f32 %v267, %v271
        %s273 = sld [smem:[#allocation2 + $0x83]]
        %v274 = vld [vmem:[%s249] sm:$0xff]
        %v275 = vstv %s273
        %v276 = vmul.f32 %v275, %v274
        %v277 = vadd.f32 %v272, %v276
        %s278 = scalar_lea.vmem %s228, 8
        %279 = vst.msk [vmem:[%s278] sm:$0xff] %vm254, %v277
        %s280 = sld [smem:[#allocation2 + $0x100]]
        %v281 = vld [vmem:[%s220] sm:$0xff]
        %v282 = vstv %s280
        %v283 = vmul.f32 %v282, %v281
        %s284 = sld [smem:[#allocation4 + $0x2]]
        %v285 = vstv %s284
        %v286 = vadd.f32 %v283, %v285
        %s287 = sld [smem:[#allocation2 + $0x101]]
        %v288 = vld [vmem:[%s237] sm:$0xff]
        %v289 = vstv %s287
        %v290 = vmul.f32 %v289, %v288
        %v291 = vadd.f32 %v286, %v290
        %s292 = sld [smem:[#allocation2 + $0x102]]
        %v293 = vld [vmem:[%s243] sm:$0xff]
        %v294 = vstv %s292
        %v295 = vmul.f32 %v294, %v293
        %v296 = vadd.f32 %v291, %v295
        %s297 = sld [smem:[#allocation2 + $0x103]]
        %v298 = vld [vmem:[%s249] sm:$0xff]
        %v299 = vstv %s297
        %v300 = vmul.f32 %v299, %v298
        %v301 = vadd.f32 %v296, %v300
        %s302 = scalar_lea.vmem %s228, 16
        %303 = vst.msk [vmem:[%s302] sm:$0xff] %vm254, %v301
        %p304 = scmp.lt.s32.totalorder %s20, 1
        %s305 = scalar_select %p304, %s20, 1
        %p306 = scmp.lt.s32.totalorder %s21, 0
        %s307 = scalar_select %p306, %s21, 0
        %s308 = smul.addr %s305, 3
        %s309 = sadd.s32 %s307, %s308
        %s310 = smul.addr %s309, 8
        %s311 = scalar_lea.vmem %s3, %s310
        // Predicated region
        $region41: #{outconv.1} parent=31 // pred_check
          %p312 = pneg %p118
        $region42: #{outconv.1} parent=31 // pred_check_branch
          %314 = sbr.rel (%p312) target = $region44
        $region43: #{outconv.1} parent=31 // pred_region
          _
        $region44: #{outconv.1} parent=31 // pred_fallthru
          _
      $region32: #{outconv.1} parent=5 // pred_fallthru
        _
      %p315 = scmp.le.s32.totalorder 2, %s11
      // Predicated region
      $region45: #{outconv.1} parent=5 // pred_check
        %p316 = pneg %p315
      $region46: #{outconv.1} parent=5 // pred_check_branch
        %318 = sbr.rel (%p316) target = $region48
      $region47: #{outconv.1} parent=5 // pred_region
        %s319 = ssub.s32 %s11, 2
        // Predicated region
        $region49: #{outconv.1} parent=47 // pred_check
          %p320 = pneg %p124
        $region50: #{outconv.1} parent=47 // pred_check_branch
          %322 = sbr.rel (%p320) target = $region52
        $region51: #{outconv.1} parent=47 // pred_region
          %p323 = scmp.lt.s32.totalorder %s22, 1
          %s324 = scalar_select %p323, %s22, 1
          %p325 = scmp.lt.s32.totalorder %s23, 0
          %s326 = scalar_select %p325, %s23, 0
          %s327 = smul.addr %s324, 3
          %s328 = sadd.s32 %s326, %s327
          %s329 = smul.addr %s328, 8
          %s330 = scalar_lea.vmem %s3, %s329
        $region52: #{outconv.1} parent=47 // pred_fallthru
          _
      $region48: #{outconv.1} parent=5 // pred_fallthru
        _
    $region6: #{outconv.1} parent=1 // loop_footer
      %s15 = sadd.s32 1, %s11
    $region7: #{outconv.1} parent=1 // loop_footer_branch
      %10 = sbr.rel target = $region3
    $region8: #{outconv.1} parent=1 // loop_exit
      _
    %331 = vsyncpa [#allocation3], 1
    %s332 = scalar_lea.sflag [#allocation3], 1
    %333 = vsyncpa %s332, 1
    %334 = vsyncpa [#allocation5], 1

</llo_original>
